<compile_context>
chip_gen: v7x
topology: tpu7x:2x2x1
jax: 0.10.0
libtpu: 0.0.40
codegen_flags: <defaults>
</compile_context>

<pallas_src>
import jax
import jax.numpy as jnp
from jax.experimental import pallas as pl
from jax.experimental.pallas import tpu as pltpu


def _round_up(a, b):
    return (a + b - 1) // b * b


def _affine(w, b, a):
    """(out,k) @ (k,Nt) + (out,1) via VPU broadcast multiply-adds (no MXU)."""
    k = w.shape[1]                       # static (2 or 10)
    acc = w[:, 0:1] * a[0:1, :]
    for j in range(1, k):
        acc = acc + w[:, j:j + 1] * a[j:j + 1, :]
    return acc + b


def _generator_kernel(x_ref, w1_ref, b1_ref, w2_ref, b2_ref, w3_ref, b3_ref, o_ref):
    x = x_ref[...]                                                 # (2, Nt) lane-dense
    h = jnp.maximum(_affine(w1_ref[...], b1_ref[...], x), 0.0)     # ReLU(fc1) -> (H, Nt)
    h = jnp.maximum(_affine(w2_ref[...], b2_ref[...], h), 0.0)     # ReLU(fc2) -> (H, Nt)
    o_ref[...] = _affine(w3_ref[...], b3_ref[...], h) + x          # fc3 + residual


def generator_forward(x, params, *, max_tile=1024):
    """x: (N, 2) float32.  params: PyTorch-layout weights (out,in), biases (out,1)."""
    n, f = x.shape
    hidden = params["w1"].shape[0]

    tile = min(max_tile, _round_up(n, 128))      # lane tile, multiple of 128
    n_pad = _round_up(n, tile)
    grid = (n_pad // tile,)

    # lane-dense working layout: (features, batch), zero-padded batch axis
    xt = jnp.zeros((f, n_pad), jnp.float32).at[:, :n].set(x.T)

    const = lambda shape: pl.BlockSpec(shape, lambda i: (0, 0))    # resident in VMEM

    out_t = pl.pallas_call(
        _generator_kernel,
        out_shape=jax.ShapeDtypeStruct((f, n_pad), jnp.float32),
        grid=grid,
        in_specs=[
            pl.BlockSpec((f, tile), lambda i: (0, i)),  # x slab, pipelined over batch
            const((hidden, f)),          # w1
            const((hidden, 1)),          # b1
            const((hidden, hidden)),     # w2
            const((hidden, 1)),          # b2
            const((f, hidden)),          # w3
            const((f, 1)),               # b3
        ],
        out_specs=pl.BlockSpec((f, tile), lambda i: (0, i)),        # lane-dense stores
        compiler_params=pltpu.CompilerParams(
            dimension_semantics=("parallel",)),                     # megacore on v7x
    )(xt, params["w1"], params["b1"], params["w2"], params["b2"],
      params["w3"], params["b3"])

    return out_t[:, :n].T


def init_params(key, hidden_dim=10, in_dim=2):
    """Deterministic init mimicking nn.Linear default (uniform +-1/sqrt(fan_in))."""
    ks = jax.random.split(key, 6)

    def lin(kw, kb, fan_in, fan_out):
        bound = 1.0 / jnp.sqrt(fan_in)
        # PyTorch layout: weight (out, in); bias stored (out, 1) for lane broadcast
        w = jax.random.uniform(kw, (fan_out, fan_in), jnp.float32, -bound, bound)
        b = jax.random.uniform(kb, (fan_out, 1), jnp.float32, -bound, bound)
        return w, b

    w1, b1 = lin(ks[0], ks[1], in_dim, hidden_dim)
    w2, b2 = lin(ks[2], ks[3], hidden_dim, hidden_dim)
    w3, b3 = lin(ks[4], ks[5], hidden_dim, in_dim)
    return {"w1": w1, "b1": b1, "w2": w2, "b2": b2, "w3": w3, "b3": b3}


def generator_ref(x, p):
    h = jnp.maximum(x @ p["w1"].T + p["b1"][:, 0], 0.0)
    h = jnp.maximum(h @ p["w2"].T + p["b2"][:, 0], 0.0)
    return h @ p["w3"].T + p["b3"][:, 0] + x


if __name__ == "__main__":
    key = jax.random.PRNGKey(0)
    k_param, k_x1, k_x2 = jax.random.split(key, 3)

    params = init_params(k_param, hidden_dim=10, in_dim=2)

    # small batch (matches the module's typical use)
    x_small = jax.random.normal(k_x1, (8, 2), jnp.float32)
    out_small = jax.block_until_ready(generator_forward(x_small, params))
    ref_small = generator_ref(x_small, params)
    assert out_small.shape == (8, 2), out_small.shape
    assert jnp.allclose(out_small, ref_small, atol=1e-5, rtol=1e-5), \
        f"max err {jnp.max(jnp.abs(out_small - ref_small))}"

    # larger, non-multiple-of-tile batch: exercises padding + multi-step pipeline
    x_big = jax.random.normal(k_x2, (2500, 2), jnp.float32)
    out_big = jax.block_until_ready(generator_forward(x_big, params))
    ref_big = generator_ref(x_big, params)
    assert out_big.shape == (2500, 2), out_big.shape
    assert jnp.allclose(out_big, ref_big, atol=1e-5, rtol=1e-5), \
        f"max err {jnp.max(jnp.abs(out_big - ref_big))}"

    print("KERNEL_OK")
</pallas_src>

<mosaic_0001>
module attributes {stable_mosaic.version = 11 : i64} {
  func.func @_generator_kernel(%arg0: i32, %arg1: memref<2x128xf32, #tpu.memory_space<vmem>>, %arg2: memref<10x2xf32, #tpu.memory_space<vmem>>, %arg3: memref<10x1xf32, #tpu.memory_space<vmem>>, %arg4: memref<10x10xf32, #tpu.memory_space<vmem>>, %arg5: memref<10x1xf32, #tpu.memory_space<vmem>>, %arg6: memref<2x10xf32, #tpu.memory_space<vmem>>, %arg7: memref<2x1xf32, #tpu.memory_space<vmem>>, %arg8: memref<2x128xf32, #tpu.memory_space<vmem>>) attributes {dimension_semantics = [#tpu.dimension_semantics<parallel>], iteration_bounds = array<i64: 1>, scalar_prefetch = 0 : i64, scratch_operands = 0 : i64, tpu.core_type = #tpu.core_type<tc>, window_params = [{transform_indices = @transform_0, window_bounds = array<i64: 2, 128>}, {pipeline_mode = #tpu.pipeline_mode<synchronous>, transform_indices = @transform_1, window_bounds = array<i64: 10, 2>}, {pipeline_mode = #tpu.pipeline_mode<synchronous>, transform_indices = @transform_2, window_bounds = array<i64: 10, 1>}, {pipeline_mode = #tpu.pipeline_mode<synchronous>, transform_indices = @transform_3, window_bounds = array<i64: 10, 10>}, {pipeline_mode = #tpu.pipeline_mode<synchronous>, transform_indices = @transform_4, window_bounds = array<i64: 10, 1>}, {pipeline_mode = #tpu.pipeline_mode<synchronous>, transform_indices = @transform_5, window_bounds = array<i64: 2, 10>}, {pipeline_mode = #tpu.pipeline_mode<synchronous>, transform_indices = @transform_6, window_bounds = array<i64: 2, 1>}, {transform_indices = @transform_7, window_bounds = array<i64: 2, 128>}]} {
    %c0 = arith.constant 0 : index
    %c0_0 = arith.constant 0 : index
    %0 = vector.load %arg1[%c0, %c0_0] : memref<2x128xf32, #tpu.memory_space<vmem>>, vector<2x128xf32>
    %c0_1 = arith.constant 0 : index
    %c0_2 = arith.constant 0 : index
    %1 = vector.load %arg2[%c0_1, %c0_2] : memref<10x2xf32, #tpu.memory_space<vmem>>, vector<10x2xf32>
    %c0_3 = arith.constant 0 : index
    %c0_4 = arith.constant 0 : index
    %2 = vector.load %arg3[%c0_3, %c0_4] : memref<10x1xf32, #tpu.memory_space<vmem>>, vector<10x1xf32>
    %3 = vector.extract_strided_slice %1 {offsets = [0, 0], sizes = [10, 1], strides = [1, 1]} : vector<10x2xf32> to vector<10x1xf32>
    %4 = vector.extract_strided_slice %0 {offsets = [0, 0], sizes = [1, 128], strides = [1, 1]} : vector<2x128xf32> to vector<1x128xf32>
    %5 = vector.broadcast %3 : vector<10x1xf32> to vector<10x128xf32>
    %6 = vector.broadcast %4 : vector<1x128xf32> to vector<10x128xf32>
    %7 = arith.mulf %5, %6 : vector<10x128xf32>
    %8 = vector.extract_strided_slice %1 {offsets = [0, 1], sizes = [10, 1], strides = [1, 1]} : vector<10x2xf32> to vector<10x1xf32>
    %9 = vector.extract_strided_slice %0 {offsets = [1, 0], sizes = [1, 128], strides = [1, 1]} : vector<2x128xf32> to vector<1x128xf32>
    %10 = vector.broadcast %8 : vector<10x1xf32> to vector<10x128xf32>
    %11 = vector.broadcast %9 : vector<1x128xf32> to vector<10x128xf32>
    %12 = arith.mulf %10, %11 : vector<10x128xf32>
    %13 = arith.addf %7, %12 : vector<10x128xf32>
    %14 = vector.broadcast %2 : vector<10x1xf32> to vector<10x128xf32>
    %15 = arith.addf %13, %14 : vector<10x128xf32>
    %cst = arith.constant 0.000000e+00 : f32
    %16 = vector.broadcast %cst : f32 to vector<10x128xf32>
    %17 = arith.maximumf %15, %16 : vector<10x128xf32>
    %c0_5 = arith.constant 0 : index
    %c0_6 = arith.constant 0 : index
    %18 = vector.load %arg4[%c0_5, %c0_6] : memref<10x10xf32, #tpu.memory_space<vmem>>, vector<10x10xf32>
    %c0_7 = arith.constant 0 : index
    %c0_8 = arith.constant 0 : index
    %19 = vector.load %arg5[%c0_7, %c0_8] : memref<10x1xf32, #tpu.memory_space<vmem>>, vector<10x1xf32>
    %20 = vector.extract_strided_slice %18 {offsets = [0, 0], sizes = [10, 1], strides = [1, 1]} : vector<10x10xf32> to vector<10x1xf32>
    %21 = vector.extract_strided_slice %17 {offsets = [0, 0], sizes = [1, 128], strides = [1, 1]} : vector<10x128xf32> to vector<1x128xf32>
    %22 = vector.broadcast %20 : vector<10x1xf32> to vector<10x128xf32>
    %23 = vector.broadcast %21 : vector<1x128xf32> to vector<10x128xf32>
    %24 = arith.mulf %22, %23 : vector<10x128xf32>
    %25 = vector.extract_strided_slice %18 {offsets = [0, 1], sizes = [10, 1], strides = [1, 1]} : vector<10x10xf32> to vector<10x1xf32>
    %26 = vector.extract_strided_slice %17 {offsets = [1, 0], sizes = [1, 128], strides = [1, 1]} : vector<10x128xf32> to vector<1x128xf32>
    %27 = vector.broadcast %25 : vector<10x1xf32> to vector<10x128xf32>
    %28 = vector.broadcast %26 : vector<1x128xf32> to vector<10x128xf32>
    %29 = arith.mulf %27, %28 : vector<10x128xf32>
    %30 = arith.addf %24, %29 : vector<10x128xf32>
    %31 = vector.extract_strided_slice %18 {offsets = [0, 2], sizes = [10, 1], strides = [1, 1]} : vector<10x10xf32> to vector<10x1xf32>
    %32 = vector.extract_strided_slice %17 {offsets = [2, 0], sizes = [1, 128], strides = [1, 1]} : vector<10x128xf32> to vector<1x128xf32>
    %33 = vector.broadcast %31 : vector<10x1xf32> to vector<10x128xf32>
    %34 = vector.broadcast %32 : vector<1x128xf32> to vector<10x128xf32>
    %35 = arith.mulf %33, %34 : vector<10x128xf32>
    %36 = arith.addf %30, %35 : vector<10x128xf32>
    %37 = vector.extract_strided_slice %18 {offsets = [0, 3], sizes = [10, 1], strides = [1, 1]} : vector<10x10xf32> to vector<10x1xf32>
    %38 = vector.extract_strided_slice %17 {offsets = [3, 0], sizes = [1, 128], strides = [1, 1]} : vector<10x128xf32> to vector<1x128xf32>
    %39 = vector.broadcast %37 : vector<10x1xf32> to vector<10x128xf32>
    %40 = vector.broadcast %38 : vector<1x128xf32> to vector<10x128xf32>
    %41 = arith.mulf %39, %40 : vector<10x128xf32>
    %42 = arith.addf %36, %41 : vector<10x128xf32>
    %43 = vector.extract_strided_slice %18 {offsets = [0, 4], sizes = [10, 1], strides = [1, 1]} : vector<10x10xf32> to vector<10x1xf32>
    %44 = vector.extract_strided_slice %17 {offsets = [4, 0], sizes = [1, 128], strides = [1, 1]} : vector<10x128xf32> to vector<1x128xf32>
    %45 = vector.broadcast %43 : vector<10x1xf32> to vector<10x128xf32>
    %46 = vector.broadcast %44 : vector<1x128xf32> to vector<10x128xf32>
    %47 = arith.mulf %45, %46 : vector<10x128xf32>
    %48 = arith.addf %42, %47 : vector<10x128xf32>
    %49 = vector.extract_strided_slice %18 {offsets = [0, 5], sizes = [10, 1], strides = [1, 1]} : vector<10x10xf32> to vector<10x1xf32>
    %50 = vector.extract_strided_slice %17 {offsets = [5, 0], sizes = [1, 128], strides = [1, 1]} : vector<10x128xf32> to vector<1x128xf32>
    %51 = vector.broadcast %49 : vector<10x1xf32> to vector<10x128xf32>
    %52 = vector.broadcast %50 : vector<1x128xf32> to vector<10x128xf32>
    %53 = arith.mulf %51, %52 : vector<10x128xf32>
    %54 = arith.addf %48, %53 : vector<10x128xf32>
    %55 = vector.extract_strided_slice %18 {offsets = [0, 6], sizes = [10, 1], strides = [1, 1]} : vector<10x10xf32> to vector<10x1xf32>
    %56 = vector.extract_strided_slice %17 {offsets = [6, 0], sizes = [1, 128], strides = [1, 1]} : vector<10x128xf32> to vector<1x128xf32>
    %57 = vector.broadcast %55 : vector<10x1xf32> to vector<10x128xf32>
    %58 = vector.broadcast %56 : vector<1x128xf32> to vector<10x128xf32>
    %59 = arith.mulf %57, %58 : vector<10x128xf32>
    %60 = arith.addf %54, %59 : vector<10x128xf32>
    %61 = vector.extract_strided_slice %18 {offsets = [0, 7], sizes = [10, 1], strides = [1, 1]} : vector<10x10xf32> to vector<10x1xf32>
    %62 = vector.extract_strided_slice %17 {offsets = [7, 0], sizes = [1, 128], strides = [1, 1]} : vector<10x128xf32> to vector<1x128xf32>
    %63 = vector.broadcast %61 : vector<10x1xf32> to vector<10x128xf32>
    %64 = vector.broadcast %62 : vector<1x128xf32> to vector<10x128xf32>
    %65 = arith.mulf %63, %64 : vector<10x128xf32>
    %66 = arith.addf %60, %65 : vector<10x128xf32>
    %67 = vector.extract_strided_slice %18 {offsets = [0, 8], sizes = [10, 1], strides = [1, 1]} : vector<10x10xf32> to vector<10x1xf32>
    %68 = vector.extract_strided_slice %17 {offsets = [8, 0], sizes = [1, 128], strides = [1, 1]} : vector<10x128xf32> to vector<1x128xf32>
    %69 = vector.broadcast %67 : vector<10x1xf32> to vector<10x128xf32>
    %70 = vector.broadcast %68 : vector<1x128xf32> to vector<10x128xf32>
    %71 = arith.mulf %69, %70 : vector<10x128xf32>
    %72 = arith.addf %66, %71 : vector<10x128xf32>
    %73 = vector.extract_strided_slice %18 {offsets = [0, 9], sizes = [10, 1], strides = [1, 1]} : vector<10x10xf32> to vector<10x1xf32>
    %74 = vector.extract_strided_slice %17 {offsets = [9, 0], sizes = [1, 128], strides = [1, 1]} : vector<10x128xf32> to vector<1x128xf32>
    %75 = vector.broadcast %73 : vector<10x1xf32> to vector<10x128xf32>
    %76 = vector.broadcast %74 : vector<1x128xf32> to vector<10x128xf32>
    %77 = arith.mulf %75, %76 : vector<10x128xf32>
    %78 = arith.addf %72, %77 : vector<10x128xf32>
    %79 = vector.broadcast %19 : vector<10x1xf32> to vector<10x128xf32>
    %80 = arith.addf %78, %79 : vector<10x128xf32>
    %cst_9 = arith.constant 0.000000e+00 : f32
    %81 = vector.broadcast %cst_9 : f32 to vector<10x128xf32>
    %82 = arith.maximumf %80, %81 : vector<10x128xf32>
    %c0_10 = arith.constant 0 : index
    %c0_11 = arith.constant 0 : index
    %83 = vector.load %arg6[%c0_10, %c0_11] : memref<2x10xf32, #tpu.memory_space<vmem>>, vector<2x10xf32>
    %c0_12 = arith.constant 0 : index
    %c0_13 = arith.constant 0 : index
    %84 = vector.load %arg7[%c0_12, %c0_13] : memref<2x1xf32, #tpu.memory_space<vmem>>, vector<2x1xf32>
    %85 = vector.extract_strided_slice %83 {offsets = [0, 0], sizes = [2, 1], strides = [1, 1]} : vector<2x10xf32> to vector<2x1xf32>
    %86 = vector.extract_strided_slice %82 {offsets = [0, 0], sizes = [1, 128], strides = [1, 1]} : vector<10x128xf32> to vector<1x128xf32>
    %87 = vector.broadcast %85 : vector<2x1xf32> to vector<2x128xf32>
    %88 = vector.broadcast %86 : vector<1x128xf32> to vector<2x128xf32>
    %89 = arith.mulf %87, %88 : vector<2x128xf32>
    %90 = vector.extract_strided_slice %83 {offsets = [0, 1], sizes = [2, 1], strides = [1, 1]} : vector<2x10xf32> to vector<2x1xf32>
    %91 = vector.extract_strided_slice %82 {offsets = [1, 0], sizes = [1, 128], strides = [1, 1]} : vector<10x128xf32> to vector<1x128xf32>
    %92 = vector.broadcast %90 : vector<2x1xf32> to vector<2x128xf32>
    %93 = vector.broadcast %91 : vector<1x128xf32> to vector<2x128xf32>
    %94 = arith.mulf %92, %93 : vector<2x128xf32>
    %95 = arith.addf %89, %94 : vector<2x128xf32>
    %96 = vector.extract_strided_slice %83 {offsets = [0, 2], sizes = [2, 1], strides = [1, 1]} : vector<2x10xf32> to vector<2x1xf32>
    %97 = vector.extract_strided_slice %82 {offsets = [2, 0], sizes = [1, 128], strides = [1, 1]} : vector<10x128xf32> to vector<1x128xf32>
    %98 = vector.broadcast %96 : vector<2x1xf32> to vector<2x128xf32>
    %99 = vector.broadcast %97 : vector<1x128xf32> to vector<2x128xf32>
    %100 = arith.mulf %98, %99 : vector<2x128xf32>
    %101 = arith.addf %95, %100 : vector<2x128xf32>
    %102 = vector.extract_strided_slice %83 {offsets = [0, 3], sizes = [2, 1], strides = [1, 1]} : vector<2x10xf32> to vector<2x1xf32>
    %103 = vector.extract_strided_slice %82 {offsets = [3, 0], sizes = [1, 128], strides = [1, 1]} : vector<10x128xf32> to vector<1x128xf32>
    %104 = vector.broadcast %102 : vector<2x1xf32> to vector<2x128xf32>
    %105 = vector.broadcast %103 : vector<1x128xf32> to vector<2x128xf32>
    %106 = arith.mulf %104, %105 : vector<2x128xf32>
    %107 = arith.addf %101, %106 : vector<2x128xf32>
    %108 = vector.extract_strided_slice %83 {offsets = [0, 4], sizes = [2, 1], strides = [1, 1]} : vector<2x10xf32> to vector<2x1xf32>
    %109 = vector.extract_strided_slice %82 {offsets = [4, 0], sizes = [1, 128], strides = [1, 1]} : vector<10x128xf32> to vector<1x128xf32>
    %110 = vector.broadcast %108 : vector<2x1xf32> to vector<2x128xf32>
    %111 = vector.broadcast %109 : vector<1x128xf32> to vector<2x128xf32>
    %112 = arith.mulf %110, %111 : vector<2x128xf32>
    %113 = arith.addf %107, %112 : vector<2x128xf32>
    %114 = vector.extract_strided_slice %83 {offsets = [0, 5], sizes = [2, 1], strides = [1, 1]} : vector<2x10xf32> to vector<2x1xf32>
    %115 = vector.extract_strided_slice %82 {offsets = [5, 0], sizes = [1, 128], strides = [1, 1]} : vector<10x128xf32> to vector<1x128xf32>
    %116 = vector.broadcast %114 : vector<2x1xf32> to vector<2x128xf32>
    %117 = vector.broadcast %115 : vector<1x128xf32> to vector<2x128xf32>
    %118 = arith.mulf %116, %117 : vector<2x128xf32>
    %119 = arith.addf %113, %118 : vector<2x128xf32>
    %120 = vector.extract_strided_slice %83 {offsets = [0, 6], sizes = [2, 1], strides = [1, 1]} : vector<2x10xf32> to vector<2x1xf32>
    %121 = vector.extract_strided_slice %82 {offsets = [6, 0], sizes = [1, 128], strides = [1, 1]} : vector<10x128xf32> to vector<1x128xf32>
    %122 = vector.broadcast %120 : vector<2x1xf32> to vector<2x128xf32>
    %123 = vector.broadcast %121 : vector<1x128xf32> to vector<2x128xf32>
    %124 = arith.mulf %122, %123 : vector<2x128xf32>
    %125 = arith.addf %119, %124 : vector<2x128xf32>
    %126 = vector.extract_strided_slice %83 {offsets = [0, 7], sizes = [2, 1], strides = [1, 1]} : vector<2x10xf32> to vector<2x1xf32>
    %127 = vector.extract_strided_slice %82 {offsets = [7, 0], sizes = [1, 128], strides = [1, 1]} : vector<10x128xf32> to vector<1x128xf32>
    %128 = vector.broadcast %126 : vector<2x1xf32> to vector<2x128xf32>
    %129 = vector.broadcast %127 : vector<1x128xf32> to vector<2x128xf32>
    %130 = arith.mulf %128, %129 : vector<2x128xf32>
    %131 = arith.addf %125, %130 : vector<2x128xf32>
    %132 = vector.extract_strided_slice %83 {offsets = [0, 8], sizes = [2, 1], strides = [1, 1]} : vector<2x10xf32> to vector<2x1xf32>
    %133 = vector.extract_strided_slice %82 {offsets = [8, 0], sizes = [1, 128], strides = [1, 1]} : vector<10x128xf32> to vector<1x128xf32>
    %134 = vector.broadcast %132 : vector<2x1xf32> to vector<2x128xf32>
    %135 = vector.broadcast %133 : vector<1x128xf32> to vector<2x128xf32>
    %136 = arith.mulf %134, %135 : vector<2x128xf32>
    %137 = arith.addf %131, %136 : vector<2x128xf32>
    %138 = vector.extract_strided_slice %83 {offsets = [0, 9], sizes = [2, 1], strides = [1, 1]} : vector<2x10xf32> to vector<2x1xf32>
    %139 = vector.extract_strided_slice %82 {offsets = [9, 0], sizes = [1, 128], strides = [1, 1]} : vector<10x128xf32> to vector<1x128xf32>
    %140 = vector.broadcast %138 : vector<2x1xf32> to vector<2x128xf32>
    %141 = vector.broadcast %139 : vector<1x128xf32> to vector<2x128xf32>
    %142 = arith.mulf %140, %141 : vector<2x128xf32>
    %143 = arith.addf %137, %142 : vector<2x128xf32>
    %144 = vector.broadcast %84 : vector<2x1xf32> to vector<2x128xf32>
    %145 = arith.addf %143, %144 : vector<2x128xf32>
    %146 = arith.addf %145, %0 : vector<2x128xf32>
    %c0_14 = arith.constant 0 : index
    %c0_15 = arith.constant 0 : index
    %147 = vector.load %arg8[%c0_14, %c0_15] : memref<2x128xf32, #tpu.memory_space<vmem>>, vector<2x128xf32>
    tpu.vector_store %arg8[%c0_14, %c0_15], %146 {strides = array<i32>} : memref<2x128xf32, #tpu.memory_space<vmem>>, vector<2x128xf32>,
    return
  }
  func.func @transform_0(%arg0: i32) -> (i32, i32) {
    %c0_i32 = arith.constant 0 : i32
    %c0_i32_0 = arith.constant 0 : i32
    return %c0_i32, %arg0 : i32, i32
  }
  func.func @transform_1(%arg0: i32) -> (i32, i32) {
    %c0_i32 = arith.constant 0 : i32
    %c0_i32_0 = arith.constant 0 : i32
    %c0_i32_1 = arith.constant 0 : i32
    return %c0_i32, %c0_i32_0 : i32, i32
  }
  func.func @transform_2(%arg0: i32) -> (i32, i32) {
    %c0_i32 = arith.constant 0 : i32
    %c0_i32_0 = arith.constant 0 : i32
    %c0_i32_1 = arith.constant 0 : i32
    return %c0_i32, %c0_i32_0 : i32, i32
  }
  func.func @transform_3(%arg0: i32) -> (i32, i32) {
    %c0_i32 = arith.constant 0 : i32
    %c0_i32_0 = arith.constant 0 : i32
    %c0_i32_1 = arith.constant 0 : i32
    return %c0_i32, %c0_i32_0 : i32, i32
  }
  func.func @transform_4(%arg0: i32) -> (i32, i32) {
    %c0_i32 = arith.constant 0 : i32
    %c0_i32_0 = arith.constant 0 : i32
    %c0_i32_1 = arith.constant 0 : i32
    return %c0_i32, %c0_i32_0 : i32, i32
  }
  func.func @transform_5(%arg0: i32) -> (i32, i32) {
    %c0_i32 = arith.constant 0 : i32
    %c0_i32_0 = arith.constant 0 : i32
    %c0_i32_1 = arith.constant 0 : i32
    return %c0_i32, %c0_i32_0 : i32, i32
  }
  func.func @transform_6(%arg0: i32) -> (i32, i32) {
    %c0_i32 = arith.constant 0 : i32
    %c0_i32_0 = arith.constant 0 : i32
    %c0_i32_1 = arith.constant 0 : i32
    return %c0_i32, %c0_i32_0 : i32, i32
  }
  func.func @transform_7(%arg0: i32) -> (i32, i32) {
    %c0_i32 = arith.constant 0 : i32
    %c0_i32_0 = arith.constant 0 : i32
    return %c0_i32, %arg0 : i32, i32
  }
}

</mosaic_0001>

<llo_original>
// kernel: tpu_custom_call.1
$region0: #{tpu_custom_call.1}
  #allocation0 [shape = 'u32[]', space=smem, size = 0x4, offset = 0x4, fixed_abs, tag = 'smem constant byte address 0x4 - core index']
  #allocation1 [shape = 'u32[144,128]{1,0:T(1,128)}', space=vmem, size = 0x12000, scoped, tag = 'internal scratch']
  %s0 = inlined_call_operand.vmem [shape: f32[2,128], index: 0, kind: input, shape index: {}]
  %s1 = inlined_call_operand.vmem [shape: f32[10,2], index: 1, kind: input, shape index: {}]
  %s2 = inlined_call_operand.vmem [shape: f32[10,1], index: 2, kind: input, shape index: {}]
  %s3 = inlined_call_operand.vmem [shape: f32[10,10], index: 3, kind: input, shape index: {}]
  %s4 = inlined_call_operand.vmem [shape: f32[10,1], index: 4, kind: input, shape index: {}]
  %s5 = inlined_call_operand.vmem [shape: f32[2,10], index: 5, kind: input, shape index: {}]
  %s6 = inlined_call_operand.vmem [shape: f32[2,1], index: 6, kind: input, shape index: {}]
  %s7 = inlined_call_operand.hbm [shape: f32[2,128], index: 7, kind: output, shape index: {}]
  %s8 = sld [smem:[#allocation0]]
  $region38: #{tpu_custom_call.1} parent=0
    _
  %s10 = ssub.s32 1, %s8
  %s11 = scalar_select 0, %s10, %s8
  $region1: #{tpu_custom_call.1} parent=0
    #allocation2 [shape = 'u8[1024]{0}', space=vmem, size = 0x400, scoped, tag = 'output window, operand 0, single buffered']
    #allocation3 [shape = 's32[1]{0}', space=sflag, size = 0x4, scoped, tag = 'scoped memory for tpu_custom_call.1']
    %12 = vsyncpa [#allocation3], 0
    // Predicated region
    $region2: #{tpu_custom_call.1} parent=1 // pred_check
      _
    $region3: #{tpu_custom_call.1} parent=1 // pred_check_branch
      %14 = sbr.rel (0) target = $region5
    $region4: #{tpu_custom_call.1} parent=1 // pred_region
      _
    $region5: #{tpu_custom_call.1} parent=1 // pred_fallthru
      _
    // Predicated region
    $region6: #{tpu_custom_call.1} parent=1 // pred_check
      _
    $region7: #{tpu_custom_call.1} parent=1 // pred_check_branch
      %16 = sbr.rel (0) target = $region9
    $region8: #{tpu_custom_call.1} parent=1 // pred_region
      _
    $region9: #{tpu_custom_call.1} parent=1 // pred_fallthru
      _
    // Predicated region
    $region10: #{tpu_custom_call.1} parent=1 // pred_check
      _
    $region11: #{tpu_custom_call.1} parent=1 // pred_check_branch
      %18 = sbr.rel (0) target = $region13
    $region12: #{tpu_custom_call.1} parent=1 // pred_region
      _
    $region13: #{tpu_custom_call.1} parent=1 // pred_fallthru
      _
    // Predicated region
    $region14: #{tpu_custom_call.1} parent=1 // pred_check
      _
    $region15: #{tpu_custom_call.1} parent=1 // pred_check_branch
      %20 = sbr.rel (0) target = $region17
    $region16: #{tpu_custom_call.1} parent=1 // pred_region
      _
    $region17: #{tpu_custom_call.1} parent=1 // pred_fallthru
      _
    // Predicated region
    $region18: #{tpu_custom_call.1} parent=1 // pred_check
      _
    $region19: #{tpu_custom_call.1} parent=1 // pred_check_branch
      %22 = sbr.rel (0) target = $region21
    $region20: #{tpu_custom_call.1} parent=1 // pred_region
      _
    $region21: #{tpu_custom_call.1} parent=1 // pred_fallthru
      _
    // Predicated region
    $region22: #{tpu_custom_call.1} parent=1 // pred_check
      _
    $region23: #{tpu_custom_call.1} parent=1 // pred_check_branch
      %24 = sbr.rel (0) target = $region25
    $region24: #{tpu_custom_call.1} parent=1 // pred_region
      _
    $region25: #{tpu_custom_call.1} parent=1 // pred_fallthru
      _
    // Predicated region
    $region26: #{tpu_custom_call.1} parent=1 // pred_check
      _
    $region27: #{tpu_custom_call.1} parent=1 // pred_check_branch
      %26 = sbr.rel (0) target = $region29
    $region28: #{tpu_custom_call.1} parent=1 // pred_region
      _
    $region29: #{tpu_custom_call.1} parent=1 // pred_fallthru
      _
    %v27 = vld [vmem:[%s0] sm:$0x3]
    %v28 = vld [vmem:[%s1] sm:$0xff]
    %v29 = vld [vmem:[%s1 + $0x8] sm:$0x3]
    %v30 = vld [vmem:[%s2] sm:$0xff]
    %v31 = vld [vmem:[%s2 + $0x8] sm:$0x3]
    %33 = vset.pattern.permute.xlu0 0
    %34 = vperm.xlu0 %33, %v28
    %v35 = vpop.permute.xlu0 %34
    %38 = vset.pattern.permute.xlu0 0
    %39 = vperm.xlu0 %38, %v29
    %v40 = vpop.permute.xlu0 %39
    %v42 = vlaneseq
    %v43 = vshrl.u32 %v42, 7
    %v44 = vsub.s32 0, %v43
    %v45 = vrot.slane %v27, %v44
    %v46 = vmul.f32 %v35, %v45
    %v47 = vmul.f32 %v40, %v45
    %48 = vset.pattern.permute.xlu0 1
    %49 = vperm.xlu0 %48, %v28
    %v50 = vpop.permute.xlu0 %49
    %52 = vset.pattern.permute.xlu0 1
    %53 = vperm.xlu0 %52, %v29
    %v54 = vpop.permute.xlu0 %53
    %v56 = vlaneseq
    %v57 = vshrl.u32 %v56, 7
    %v58 = vsub.s32 1, %v57
    %v59 = vrot.slane %v27, %v58
    %v60 = vmul.f32 %v50, %v59
    %v61 = vmul.f32 %v54, %v59
    %v62 = vadd.f32 %v46, %v60
    %v63 = vadd.f32 %v47, %v61
    %65 = vset.pattern.permute.xlu0 0
    %66 = vperm.xlu0 %65, %v30
    %v67 = vpop.permute.xlu0 %66
    %70 = vset.pattern.permute.xlu0 0
    %71 = vperm.xlu0 %70, %v31
    %v72 = vpop.permute.xlu0 %71
    %v74 = vadd.f32 %v62, %v67
    %v75 = vadd.f32 %v63, %v72
    %v76 = vmax.f32 %v74, 0.0
    %v77 = vmax.f32 %v75, 0.0
    %v78 = vld [vmem:[%s3] sm:$0xff]
    %v79 = vld [vmem:[%s3 + $0x8] sm:$0x3]
    %v80 = vld [vmem:[%s4] sm:$0xff]
    %v81 = vld [vmem:[%s4 + $0x8] sm:$0x3]
    %83 = vset.pattern.permute.xlu0 0
    %84 = vperm.xlu0 %83, %v78
    %v85 = vpop.permute.xlu0 %84
    %88 = vset.pattern.permute.xlu0 0
    %89 = vperm.xlu0 %88, %v79
    %v90 = vpop.permute.xlu0 %89
    %v92 = vlaneseq
    %v93 = vshrl.u32 %v92, 7
    %v94 = vsub.s32 0, %v93
    %v95 = vrot.slane %v76, %v94
    %v96 = vmul.f32 %v85, %v95
    %v97 = vmul.f32 %v90, %v95
    %98 = vset.pattern.permute.xlu0 1
    %99 = vperm.xlu0 %98, %v78
    %v100 = vpop.permute.xlu0 %99
    %102 = vset.pattern.permute.xlu0 1
    %103 = vperm.xlu0 %102, %v79
    %v104 = vpop.permute.xlu0 %103
    %v106 = vlaneseq
    %v107 = vshrl.u32 %v106, 7
    %v108 = vsub.s32 1, %v107
    %v109 = vrot.slane %v76, %v108
    %v110 = vmul.f32 %v100, %v109
    %v111 = vmul.f32 %v104, %v109
    %v112 = vadd.f32 %v96, %v110
    %v113 = vadd.f32 %v97, %v111
    %114 = vset.pattern.permute.xlu0 2
    %115 = vperm.xlu0 %114, %v78
    %v116 = vpop.permute.xlu0 %115
    %118 = vset.pattern.permute.xlu0 2
    %119 = vperm.xlu0 %118, %v79
    %v120 = vpop.permute.xlu0 %119
    %v122 = vlaneseq
    %v123 = vshrl.u32 %v122, 7
    %v124 = vsub.s32 2, %v123
    %v125 = vrot.slane %v76, %v124
    %v126 = vmul.f32 %v116, %v125
    %v127 = vmul.f32 %v120, %v125
    %v128 = vadd.f32 %v112, %v126
    %v129 = vadd.f32 %v113, %v127
    %130 = vset.pattern.permute.xlu0 3
    %131 = vperm.xlu0 %130, %v78
    %v132 = vpop.permute.xlu0 %131
    %134 = vset.pattern.permute.xlu0 3
    %135 = vperm.xlu0 %134, %v79
    %v136 = vpop.permute.xlu0 %135
    %v138 = vlaneseq
    %v139 = vshrl.u32 %v138, 7
    %v140 = vsub.s32 3, %v139
    %v141 = vrot.slane %v76, %v140
    %v142 = vmul.f32 %v132, %v141
    %v143 = vmul.f32 %v136, %v141
    %v144 = vadd.f32 %v128, %v142
    %v145 = vadd.f32 %v129, %v143
    %146 = vset.pattern.permute.xlu0 4
    %147 = vperm.xlu0 %146, %v78
    %v148 = vpop.permute.xlu0 %147
    %150 = vset.pattern.permute.xlu0 4
    %151 = vperm.xlu0 %150, %v79
    %v152 = vpop.permute.xlu0 %151
    %v154 = vlaneseq
    %v155 = vshrl.u32 %v154, 7
    %v156 = vsub.s32 4, %v155
    %v157 = vrot.slane %v76, %v156
    %v158 = vmul.f32 %v148, %v157
    %v159 = vmul.f32 %v152, %v157
    %v160 = vadd.f32 %v144, %v158
    %v161 = vadd.f32 %v145, %v159
    %162 = vset.pattern.permute.xlu0 5
    %163 = vperm.xlu0 %162, %v78
    %v164 = vpop.permute.xlu0 %163
    %166 = vset.pattern.permute.xlu0 5
    %167 = vperm.xlu0 %166, %v79
    %v168 = vpop.permute.xlu0 %167
    %v170 = vlaneseq
    %v171 = vshrl.u32 %v170, 7
    %v172 = vsub.s32 5, %v171
    %v173 = vrot.slane %v76, %v172
    %v174 = vmul.f32 %v164, %v173
    %v175 = vmul.f32 %v168, %v173
    %v176 = vadd.f32 %v160, %v174
    %v177 = vadd.f32 %v161, %v175
    %178 = vset.pattern.permute.xlu0 6
    %179 = vperm.xlu0 %178, %v78
    %v180 = vpop.permute.xlu0 %179
    %182 = vset.pattern.permute.xlu0 6
    %183 = vperm.xlu0 %182, %v79
    %v184 = vpop.permute.xlu0 %183
    %v186 = vlaneseq
    %v187 = vshrl.u32 %v186, 7
    %v188 = vsub.s32 6, %v187
    %v189 = vrot.slane %v76, %v188
    %v190 = vmul.f32 %v180, %v189
    %v191 = vmul.f32 %v184, %v189
    %v192 = vadd.f32 %v176, %v190
    %v193 = vadd.f32 %v177, %v191
    %194 = vset.pattern.permute.xlu0 7
    %195 = vperm.xlu0 %194, %v78
    %v196 = vpop.permute.xlu0 %195
    %198 = vset.pattern.permute.xlu0 7
    %199 = vperm.xlu0 %198, %v79
    %v200 = vpop.permute.xlu0 %199
    %v202 = vlaneseq
    %v203 = vshrl.u32 %v202, 7
    %v204 = vsub.s32 7, %v203
    %v205 = vrot.slane %v76, %v204
    %v206 = vmul.f32 %v196, %v205
    %v207 = vmul.f32 %v200, %v205
    %v208 = vadd.f32 %v192, %v206
    %v209 = vadd.f32 %v193, %v207
    %210 = vset.pattern.permute.xlu0 8
    %211 = vperm.xlu0 %210, %v78
    %v212 = vpop.permute.xlu0 %211
    %214 = vset.pattern.permute.xlu0 8
    %215 = vperm.xlu0 %214, %v79
    %v216 = vpop.permute.xlu0 %215
    %v218 = vlaneseq
    %v219 = vshrl.u32 %v218, 7
    %v220 = vsub.s32 0, %v219
    %v221 = vrot.slane %v77, %v220
    %v222 = vmul.f32 %v212, %v221
    %v223 = vmul.f32 %v216, %v221
    %v224 = vadd.f32 %v208, %v222
    %v225 = vadd.f32 %v209, %v223
    %226 = vset.pattern.permute.xlu0 9
    %227 = vperm.xlu0 %226, %v78
    %v228 = vpop.permute.xlu0 %227
    %230 = vset.pattern.permute.xlu0 9
    %231 = vperm.xlu0 %230, %v79
    %v232 = vpop.permute.xlu0 %231
    %v234 = vlaneseq
    %v235 = vshrl.u32 %v234, 7
    %v236 = vsub.s32 1, %v235
    %v237 = vrot.slane %v77, %v236
    %v238 = vmul.f32 %v228, %v237
    %v239 = vmul.f32 %v232, %v237
    %v240 = vadd.f32 %v224, %v238
    %v241 = vadd.f32 %v225, %v239
    %243 = vset.pattern.permute.xlu0 0
    %244 = vperm.xlu0 %243, %v80
    %v245 = vpop.permute.xlu0 %244
    %248 = vset.pattern.permute.xlu0 0
    %249 = vperm.xlu0 %248, %v81
    %v250 = vpop.permute.xlu0 %249
    %v252 = vadd.f32 %v240, %v245
    %v253 = vadd.f32 %v241, %v250
    %v254 = vmax.f32 %v252, 0.0
    %v255 = vmax.f32 %v253, 0.0
    %v256 = vld [vmem:[%s5] sm:$0x3]
    %v257 = vld [vmem:[%s6] sm:$0x3]
    %259 = vset.pattern.permute.xlu0 0
    %260 = vperm.xlu0 %259, %v256
    %v261 = vpop.permute.xlu0 %260
    %v263 = vlaneseq
    %v264 = vshrl.u32 %v263, 7
    %v265 = vsub.s32 0, %v264
    %v266 = vrot.slane %v254, %v265
    %v267 = vmul.f32 %v261, %v266
    %268 = vset.pattern.permute.xlu0 1
    %269 = vperm.xlu0 %268, %v256
    %v270 = vpop.permute.xlu0 %269
    %v272 = vlaneseq
    %v273 = vshrl.u32 %v272, 7
    %v274 = vsub.s32 1, %v273
    %v275 = vrot.slane %v254, %v274
    %v276 = vmul.f32 %v270, %v275
    %v277 = vadd.f32 %v267, %v276
    %278 = vset.pattern.permute.xlu0 2
    %279 = vperm.xlu0 %278, %v256
    %v280 = vpop.permute.xlu0 %279
    %v282 = vlaneseq
    %v283 = vshrl.u32 %v282, 7
    %v284 = vsub.s32 2, %v283
    %v285 = vrot.slane %v254, %v284
    %v286 = vmul.f32 %v280, %v285
    %v287 = vadd.f32 %v277, %v286
    %288 = vset.pattern.permute.xlu0 3
    %289 = vperm.xlu0 %288, %v256
    %v290 = vpop.permute.xlu0 %289
    %v292 = vlaneseq
    %v293 = vshrl.u32 %v292, 7
    %v294 = vsub.s32 3, %v293
    %v295 = vrot.slane %v254, %v294
    %v296 = vmul.f32 %v290, %v295
    %v297 = vadd.f32 %v287, %v296
    %298 = vset.pattern.permute.xlu0 4
    %299 = vperm.xlu0 %298, %v256
    %v300 = vpop.permute.xlu0 %299
    %v302 = vlaneseq
    %v303 = vshrl.u32 %v302, 7
    %v304 = vsub.s32 4, %v303
    %v305 = vrot.slane %v254, %v304
    %v306 = vmul.f32 %v300, %v305
    %v307 = vadd.f32 %v297, %v306
    %308 = vset.pattern.permute.xlu0 5
    %309 = vperm.xlu0 %308, %v256
    %v310 = vpop.permute.xlu0 %309
    %v312 = vlaneseq
    %v313 = vshrl.u32 %v312, 7
    %v314 = vsub.s32 5, %v313
    %v315 = vrot.slane %v254, %v314
    %v316 = vmul.f32 %v310, %v315
    %v317 = vadd.f32 %v307, %v316
    %318 = vset.pattern.permute.xlu0 6
    %319 = vperm.xlu0 %318, %v256
    %v320 = vpop.permute.xlu0 %319
    %v322 = vlaneseq
    %v323 = vshrl.u32 %v322, 7
    %v324 = vsub.s32 6, %v323
    %v325 = vrot.slane %v254, %v324
    %v326 = vmul.f32 %v320, %v325
    %v327 = vadd.f32 %v317, %v326
    %328 = vset.pattern.permute.xlu0 7
    %329 = vperm.xlu0 %328, %v256
    %v330 = vpop.permute.xlu0 %329
    %v332 = vlaneseq
    %v333 = vshrl.u32 %v332, 7
    %v334 = vsub.s32 7, %v333
    %v335 = vrot.slane %v254, %v334
    %v336 = vmul.f32 %v330, %v335
    %v337 = vadd.f32 %v327, %v336
    %338 = vset.pattern.permute.xlu0 8
    %339 = vperm.xlu0 %338, %v256
    %v340 = vpop.permute.xlu0 %339
    %v342 = vlaneseq
    %v343 = vshrl.u32 %v342, 7
    %v344 = vsub.s32 0, %v343
    %v345 = vrot.slane %v255, %v344
    %v346 = vmul.f32 %v340, %v345
    %v347 = vadd.f32 %v337, %v346
    %348 = vset.pattern.permute.xlu0 9
    %349 = vperm.xlu0 %348, %v256
    %v350 = vpop.permute.xlu0 %349
    %v352 = vlaneseq
    %v353 = vshrl.u32 %v352, 7
    %v354 = vsub.s32 1, %v353
    %v355 = vrot.slane %v255, %v354
    %v356 = vmul.f32 %v350, %v355
    %v357 = vadd.f32 %v347, %v356
    %359 = vset.pattern.permute.xlu0 0
    %360 = vperm.xlu0 %359, %v257
    %v361 = vpop.permute.xlu0 %360
    %v363 = vadd.f32 %v357, %v361
    %v364 = vadd.f32 %v363, %v27
    %365 = vst [vmem:[#allocation2] sm:$0x3] %v364
    // Predicated region
    $region30: #{tpu_custom_call.1} parent=1 // pred_check
      _
    $region31: #{tpu_custom_call.1} parent=1 // pred_check_branch
      %367 = sbr.rel (0) target = $region33
    $region32: #{tpu_custom_call.1} parent=1 // pred_region
      %s369 = ssub.s32 32, 32
      %370 = vsyncadd [#allocation3], %s369
      %s372 = sshll.u32 [#allocation2], 4
      %s373 = int_to_ptr.vmem [resolvable:$true] %s372
      %375 = dma.vmem_to_hbm [thread:$0]  %s373, 32, %s7, [#allocation3]
    $region33: #{tpu_custom_call.1} parent=1 // pred_fallthru
      _
    // Predicated region
    $region34: #{tpu_custom_call.1} parent=1 // pred_check
      _
    $region35: #{tpu_custom_call.1} parent=1 // pred_check_branch
      %377 = sbr.rel (0) target = $region37
    $region36: #{tpu_custom_call.1} parent=1 // pred_region
      %378 = dma.done [#allocation3], 32
    $region37: #{tpu_custom_call.1} parent=1 // pred_fallthru
      _
    %379 = vsyncpa [#allocation3], 1

</llo_original>
